<compile_context>
chip_gen: v5e
topology: v5e:2x2
jax: 0.10.0
libtpu: 0.0.40
codegen_flags: <defaults>
</compile_context>

<pallas_src>
import functools

import jax
import jax.numpy as jnp
from jax.experimental import pallas as pl
from jax.experimental.pallas import tpu as pltpu


LANE = 128      # lane width: pad feature dims to multiples of this
SUBLANE = 8     # sublane width: batch tiles must be multiples of this
MAX_TB = 512    # rows per grid step (multiple of 8; comfortably inside VMEM)


def _round_up(n, m):
    return ((n + m - 1) // m) * m


def backbone_kernel(x_ref, w1_ref, b1_ref, w2_ref, b2_ref, w3_ref, b3_ref, o_ref):
    x = x_ref[...]            # (TB, 2)
    w1 = w1_ref[...]          # (2, Hp)

    # fc1 + ReLU: K=2 contraction done on the VPU as two broadcast multiply-adds
    # (avoids a near-empty MXU pass whose fill/drain latency would dominate).
    h = x[:, 0:1] * w1[0:1, :] + x[:, 1:2] * w1[1:2, :] + b1_ref[...]
    h = jnp.maximum(h, 0.0)

    # fc2 + ReLU on the MXU (Hp x Hp, lane-dense).
    h = jnp.dot(h, w2_ref[...], preferred_element_type=jnp.float32) + b2_ref[...]
    h = jnp.maximum(h, 0.0)

    # fc3 (no activation). Output lane dim is padded to 128 -> unmasked stores.
    o_ref[...] = (
        jnp.dot(h, w3_ref[...], preferred_element_type=jnp.float32) + b3_ref[...]
    ).astype(o_ref.dtype)


def _pad_params(params):
    """Zero-pad feature (lane) dims of weights/biases up to multiples of 128."""
    w1, b1, w2, b2, w3, b3 = params
    H = w1.shape[1]
    E = w3.shape[1]
    Hp = _round_up(H, LANE)
    Ep = _round_up(E, LANE)
    w1p = jnp.pad(w1, ((0, 0), (0, Hp - H)))
    b1p = jnp.pad(b1, ((0, 0), (0, Hp - H)))
    w2p = jnp.pad(w2, ((0, Hp - H), (0, Hp - H)))
    b2p = jnp.pad(b2, ((0, 0), (0, Hp - H)))
    w3p = jnp.pad(w3, ((0, Hp - H), (0, Ep - E)))
    b3p = jnp.pad(b3, ((0, 0), (0, Ep - E)))
    return (w1p, b1p, w2p, b2p, w3p, b3p), Hp, Ep


@functools.partial(jax.jit, static_argnames=("block_b",))
def backbone_forward(x, params, *, block_b=MAX_TB):
    """y = fc3(relu(fc2(relu(fc1(x))))). x: (B, 2) f32. Weights stored as (in, out)."""
    B = x.shape[0]
    E = params[4].shape[1]

    (w1p, b1p, w2p, b2p, w3p, b3p), Hp, Ep = _pad_params(params)

    # Batch tile: multiple of 8, capped so everything fits comfortably in VMEM.
    TB = min(block_b, _round_up(B, SUBLANE))
    Bp = _round_up(B, TB)
    if Bp != B:
        x = jnp.pad(x, ((0, Bp - B), (0, 0)))

    grid = (Bp // TB,)

    out_padded = pl.pallas_call(
        backbone_kernel,
        out_shape=jax.ShapeDtypeStruct((Bp, Ep), jnp.float32),
        grid=grid,
        in_specs=[
            pl.BlockSpec((TB, 2), lambda i: (i, 0)),      # x: tiled over batch
            pl.BlockSpec((2, Hp), lambda i: (0, 0)),      # w1: resident
            pl.BlockSpec((1, Hp), lambda i: (0, 0)),      # b1
            pl.BlockSpec((Hp, Hp), lambda i: (0, 0)),     # w2
            pl.BlockSpec((1, Hp), lambda i: (0, 0)),      # b2
            pl.BlockSpec((Hp, Ep), lambda i: (0, 0)),     # w3
            pl.BlockSpec((1, Ep), lambda i: (0, 0)),      # b3
        ],
        out_specs=pl.BlockSpec((TB, Ep), lambda i: (i, 0)),
        compiler_params=pltpu.CompilerParams(
            dimension_semantics=("parallel",),
        ),
    )(x, w1p, b1p, w2p, b2p, w3p, b3p)

    return out_padded[:B, :E]


def init_backbone_params(key, hidden_dim, emb_dim):
    # Deterministic synthetic init (matches PyTorch Linear shapes, stored transposed as (in, out)).
    k1, k2, k3, k4, k5, k6 = jax.random.split(key, 6)
    w1 = jax.random.normal(k1, (2, hidden_dim), jnp.float32) * 0.1           # fc1.weight.T
    b1 = jax.random.normal(k2, (1, hidden_dim), jnp.float32) * 0.1           # fc1.bias
    w2 = jax.random.normal(k3, (hidden_dim, hidden_dim), jnp.float32) * 0.1  # fc2.weight.T
    b2 = jax.random.normal(k4, (1, hidden_dim), jnp.float32) * 0.1           # fc2.bias
    w3 = jax.random.normal(k5, (hidden_dim, emb_dim), jnp.float32) * 0.1     # fc3.weight.T
    b3 = jax.random.normal(k6, (1, emb_dim), jnp.float32) * 0.1              # fc3.bias
    return (w1, b1, w2, b2, w3, b3)


def backbone_reference(x, params):
    (w1, b1, w2, b2, w3, b3) = params
    h = jax.nn.relu(x @ w1 + b1)
    h = jax.nn.relu(h @ w2 + b2)
    return h @ w3 + b3


if __name__ == "__main__":
    key = jax.random.PRNGKey(0)
    kx, kp, kx2 = jax.random.split(key, 3)

    batch, hidden_dim, emb_dim = 8, 32, 16
    x = jax.random.normal(kx, (batch, 2), jnp.float32)
    params = init_backbone_params(kp, hidden_dim, emb_dim)

    out = backbone_forward(x, params)
    jax.block_until_ready(out)
    ref = backbone_reference(x, params)
    assert out.shape == (batch, emb_dim)
    assert jnp.allclose(out, ref, atol=1e-5, rtol=1e-5)

    # Larger, non-tile-aligned batch: exercises the batch grid + padding path.
    big_batch = 1000
    x_big = jax.random.normal(kx2, (big_batch, 2), jnp.float32)
    out_big = backbone_forward(x_big, params)
    jax.block_until_ready(out_big)
    ref_big = backbone_reference(x_big, params)
    assert out_big.shape == (big_batch, emb_dim)
    assert jnp.allclose(out_big, ref_big, atol=1e-5, rtol=1e-5)

    print("KERNEL_OK")
</pallas_src>

<mosaic_0001>
module attributes {stable_mosaic.version = 11 : i64} {
  func.func @backbone_kernel(%arg0: i32, %arg1: memref<8x2xf32, #tpu.memory_space<vmem>>, %arg2: memref<2x128xf32, #tpu.memory_space<vmem>>, %arg3: memref<1x128xf32, #tpu.memory_space<vmem>>, %arg4: memref<128x128xf32, #tpu.memory_space<vmem>>, %arg5: memref<1x128xf32, #tpu.memory_space<vmem>>, %arg6: memref<128x128xf32, #tpu.memory_space<vmem>>, %arg7: memref<1x128xf32, #tpu.memory_space<vmem>>, %arg8: memref<8x128xf32, #tpu.memory_space<vmem>>) attributes {dimension_semantics = [#tpu.dimension_semantics<parallel>], iteration_bounds = array<i64: 1>, scalar_prefetch = 0 : i64, scratch_operands = 0 : i64, tpu.core_type = #tpu.core_type<tc>, window_params = [{transform_indices = @transform_0, window_bounds = array<i64: 8, 2>}, {pipeline_mode = #tpu.pipeline_mode<synchronous>, transform_indices = @transform_1, window_bounds = array<i64: 2, 128>}, {pipeline_mode = #tpu.pipeline_mode<synchronous>, transform_indices = @transform_2, window_bounds = array<i64: 1, 128>}, {pipeline_mode = #tpu.pipeline_mode<synchronous>, transform_indices = @transform_3, window_bounds = array<i64: 128, 128>}, {pipeline_mode = #tpu.pipeline_mode<synchronous>, transform_indices = @transform_4, window_bounds = array<i64: 1, 128>}, {pipeline_mode = #tpu.pipeline_mode<synchronous>, transform_indices = @transform_5, window_bounds = array<i64: 128, 128>}, {pipeline_mode = #tpu.pipeline_mode<synchronous>, transform_indices = @transform_6, window_bounds = array<i64: 1, 128>}, {transform_indices = @transform_7, window_bounds = array<i64: 8, 128>}]} {
    %c0 = arith.constant 0 : index
    %c0_0 = arith.constant 0 : index
    %0 = vector.load %arg1[%c0, %c0_0] : memref<8x2xf32, #tpu.memory_space<vmem>>, vector<8x2xf32>
    %c0_1 = arith.constant 0 : index
    %c0_2 = arith.constant 0 : index
    %1 = vector.load %arg2[%c0_1, %c0_2] : memref<2x128xf32, #tpu.memory_space<vmem>>, vector<2x128xf32>
    %2 = vector.extract_strided_slice %0 {offsets = [0, 0], sizes = [8, 1], strides = [1, 1]} : vector<8x2xf32> to vector<8x1xf32>
    %3 = vector.extract_strided_slice %1 {offsets = [0, 0], sizes = [1, 128], strides = [1, 1]} : vector<2x128xf32> to vector<1x128xf32>
    %4 = vector.broadcast %2 : vector<8x1xf32> to vector<8x128xf32>
    %5 = vector.broadcast %3 : vector<1x128xf32> to vector<8x128xf32>
    %6 = arith.mulf %4, %5 : vector<8x128xf32>
    %7 = vector.extract_strided_slice %0 {offsets = [0, 1], sizes = [8, 1], strides = [1, 1]} : vector<8x2xf32> to vector<8x1xf32>
    %8 = vector.extract_strided_slice %1 {offsets = [1, 0], sizes = [1, 128], strides = [1, 1]} : vector<2x128xf32> to vector<1x128xf32>
    %9 = vector.broadcast %7 : vector<8x1xf32> to vector<8x128xf32>
    %10 = vector.broadcast %8 : vector<1x128xf32> to vector<8x128xf32>
    %11 = arith.mulf %9, %10 : vector<8x128xf32>
    %12 = arith.addf %6, %11 : vector<8x128xf32>
    %c0_3 = arith.constant 0 : index
    %c0_4 = arith.constant 0 : index
    %13 = vector.load %arg3[%c0_3, %c0_4] : memref<1x128xf32, #tpu.memory_space<vmem>>, vector<1x128xf32>
    %14 = vector.broadcast %13 : vector<1x128xf32> to vector<8x128xf32>
    %15 = arith.addf %12, %14 : vector<8x128xf32>
    %cst = arith.constant 0.000000e+00 : f32
    %16 = vector.broadcast %cst : f32 to vector<8x128xf32>
    %17 = arith.maximumf %15, %16 : vector<8x128xf32>
    %c0_5 = arith.constant 0 : index
    %c0_6 = arith.constant 0 : index
    %18 = vector.load %arg4[%c0_5, %c0_6] : memref<128x128xf32, #tpu.memory_space<vmem>>, vector<128x128xf32>
    %cst_7 = arith.constant dense<0.000000e+00> : vector<8x128xf32>
    %19 = tpu.matmul %17, %18, %cst_7 {dimension_numbers = #tpu.dot_dimension_numbers<[1], [0], [0], [1], [0, 0, 1, 1], [], []>} : vector<8x128xf32>, vector<128x128xf32>, vector<8x128xf32> -> vector<8x128xf32>
    %c0_8 = arith.constant 0 : index
    %c0_9 = arith.constant 0 : index
    %20 = vector.load %arg5[%c0_8, %c0_9] : memref<1x128xf32, #tpu.memory_space<vmem>>, vector<1x128xf32>
    %21 = vector.broadcast %20 : vector<1x128xf32> to vector<8x128xf32>
    %22 = arith.addf %19, %21 : vector<8x128xf32>
    %cst_10 = arith.constant 0.000000e+00 : f32
    %23 = vector.broadcast %cst_10 : f32 to vector<8x128xf32>
    %24 = arith.maximumf %22, %23 : vector<8x128xf32>
    %c0_11 = arith.constant 0 : index
    %c0_12 = arith.constant 0 : index
    %25 = vector.load %arg6[%c0_11, %c0_12] : memref<128x128xf32, #tpu.memory_space<vmem>>, vector<128x128xf32>
    %cst_13 = arith.constant dense<0.000000e+00> : vector<8x128xf32>
    %26 = tpu.matmul %24, %25, %cst_13 {dimension_numbers = #tpu.dot_dimension_numbers<[1], [0], [0], [1], [0, 0, 1, 1], [], []>} : vector<8x128xf32>, vector<128x128xf32>, vector<8x128xf32> -> vector<8x128xf32>
    %c0_14 = arith.constant 0 : index
    %c0_15 = arith.constant 0 : index
    %27 = vector.load %arg7[%c0_14, %c0_15] : memref<1x128xf32, #tpu.memory_space<vmem>>, vector<1x128xf32>
    %28 = vector.broadcast %27 : vector<1x128xf32> to vector<8x128xf32>
    %29 = arith.addf %26, %28 : vector<8x128xf32>
    %c0_16 = arith.constant 0 : index
    %c0_17 = arith.constant 0 : index
    %30 = vector.load %arg8[%c0_16, %c0_17] : memref<8x128xf32, #tpu.memory_space<vmem>>, vector<8x128xf32>
    tpu.vector_store %arg8[%c0_16, %c0_17], %29 {strides = array<i32>} : memref<8x128xf32, #tpu.memory_space<vmem>>, vector<8x128xf32>,
    return
  }
  func.func @transform_0(%arg0: i32) -> (i32, i32) {
    %c0_i32 = arith.constant 0 : i32
    %c0_i32_0 = arith.constant 0 : i32
    return %arg0, %c0_i32 : i32, i32
  }
  func.func @transform_1(%arg0: i32) -> (i32, i32) {
    %c0_i32 = arith.constant 0 : i32
    %c0_i32_0 = arith.constant 0 : i32
    %c0_i32_1 = arith.constant 0 : i32
    return %c0_i32, %c0_i32_0 : i32, i32
  }
  func.func @transform_2(%arg0: i32) -> (i32, i32) {
    %c0_i32 = arith.constant 0 : i32
    %c0_i32_0 = arith.constant 0 : i32
    %c0_i32_1 = arith.constant 0 : i32
    return %c0_i32, %c0_i32_0 : i32, i32
  }
  func.func @transform_3(%arg0: i32) -> (i32, i32) {
    %c0_i32 = arith.constant 0 : i32
    %c0_i32_0 = arith.constant 0 : i32
    %c0_i32_1 = arith.constant 0 : i32
    return %c0_i32, %c0_i32_0 : i32, i32
  }
  func.func @transform_4(%arg0: i32) -> (i32, i32) {
    %c0_i32 = arith.constant 0 : i32
    %c0_i32_0 = arith.constant 0 : i32
    %c0_i32_1 = arith.constant 0 : i32
    return %c0_i32, %c0_i32_0 : i32, i32
  }
  func.func @transform_5(%arg0: i32) -> (i32, i32) {
    %c0_i32 = arith.constant 0 : i32
    %c0_i32_0 = arith.constant 0 : i32
    %c0_i32_1 = arith.constant 0 : i32
    return %c0_i32, %c0_i32_0 : i32, i32
  }
  func.func @transform_6(%arg0: i32) -> (i32, i32) {
    %c0_i32 = arith.constant 0 : i32
    %c0_i32_0 = arith.constant 0 : i32
    %c0_i32_1 = arith.constant 0 : i32
    return %c0_i32, %c0_i32_0 : i32, i32
  }
  func.func @transform_7(%arg0: i32) -> (i32, i32) {
    %c0_i32 = arith.constant 0 : i32
    %c0_i32_0 = arith.constant 0 : i32
    return %arg0, %c0_i32 : i32, i32
  }
}

</mosaic_0001>

<llo_original>
// kernel: backbone_forward.1
$region0: #{backbone_forward.1}
  #allocation0 [shape = 'u32[]', space=smem, size = 0x4, offset = 0x4, fixed_abs, tag = 'smem constant byte address 0x4 - core index']
  #allocation1 [shape = 'u32[72,128]{1,0:T(1,128)}', space=vmem, size = 0x9000, scoped, tag = 'internal scratch']
  %s0 = inlined_call_operand.vmem [shape: f32[8,2], index: 0, kind: input, shape index: {}]
  %s1 = inlined_call_operand.vmem [shape: f32[2,128], index: 1, kind: input, shape index: {}]
  %s2 = inlined_call_operand.vmem [shape: f32[1,128], index: 2, kind: input, shape index: {}]
  %s3 = inlined_call_operand.vmem [shape: f32[128,128], index: 3, kind: input, shape index: {}]
  %s4 = inlined_call_operand.vmem [shape: f32[1,128], index: 4, kind: input, shape index: {}]
  %s5 = inlined_call_operand.vmem [shape: f32[128,128], index: 5, kind: input, shape index: {}]
  %s6 = inlined_call_operand.vmem [shape: f32[1,128], index: 6, kind: input, shape index: {}]
  %s7 = inlined_call_operand.hbm [shape: f32[8,128], index: 7, kind: output, shape index: {}]
  %s8 = sld [smem:[#allocation0]]
  $region38: #{backbone_forward.1} parent=0
    _
  %s10 = ssub.s32 1, %s8
  %s11 = scalar_select 0, %s10, %s8
  $region1: #{backbone_forward.1} parent=0
    #allocation2 [shape = 'u8[4096]{0}', space=vmem, size = 0x1000, scoped, tag = 'output window, operand 0, single buffered']
    #allocation3 [shape = 's32[1]{0}', space=sflag, size = 0x4, scoped, tag = 'scoped memory for backbone_forward.1']
    %12 = vsyncpa [#allocation3], 0
    // Predicated region
    $region2: #{backbone_forward.1} parent=1 // pred_check
      _
    $region3: #{backbone_forward.1} parent=1 // pred_check_branch
      %14 = sbr.rel (0) target = $region5
    $region4: #{backbone_forward.1} parent=1 // pred_region
      _
    $region5: #{backbone_forward.1} parent=1 // pred_fallthru
      _
    // Predicated region
    $region6: #{backbone_forward.1} parent=1 // pred_check
      _
    $region7: #{backbone_forward.1} parent=1 // pred_check_branch
      %16 = sbr.rel (0) target = $region9
    $region8: #{backbone_forward.1} parent=1 // pred_region
      _
    $region9: #{backbone_forward.1} parent=1 // pred_fallthru
      _
    // Predicated region
    $region10: #{backbone_forward.1} parent=1 // pred_check
      _
    $region11: #{backbone_forward.1} parent=1 // pred_check_branch
      %18 = sbr.rel (0) target = $region13
    $region12: #{backbone_forward.1} parent=1 // pred_region
      _
    $region13: #{backbone_forward.1} parent=1 // pred_fallthru
      _
    // Predicated region
    $region14: #{backbone_forward.1} parent=1 // pred_check
      _
    $region15: #{backbone_forward.1} parent=1 // pred_check_branch
      %20 = sbr.rel (0) target = $region17
    $region16: #{backbone_forward.1} parent=1 // pred_region
      _
    $region17: #{backbone_forward.1} parent=1 // pred_fallthru
      _
    // Predicated region
    $region18: #{backbone_forward.1} parent=1 // pred_check
      _
    $region19: #{backbone_forward.1} parent=1 // pred_check_branch
      %22 = sbr.rel (0) target = $region21
    $region20: #{backbone_forward.1} parent=1 // pred_region
      _
    $region21: #{backbone_forward.1} parent=1 // pred_fallthru
      _
    // Predicated region
    $region22: #{backbone_forward.1} parent=1 // pred_check
      _
    $region23: #{backbone_forward.1} parent=1 // pred_check_branch
      %24 = sbr.rel (0) target = $region25
    $region24: #{backbone_forward.1} parent=1 // pred_region
      _
    $region25: #{backbone_forward.1} parent=1 // pred_fallthru
      _
    // Predicated region
    $region26: #{backbone_forward.1} parent=1 // pred_check
      _
    $region27: #{backbone_forward.1} parent=1 // pred_check_branch
      %26 = sbr.rel (0) target = $region29
    $region28: #{backbone_forward.1} parent=1 // pred_region
      _
    $region29: #{backbone_forward.1} parent=1 // pred_fallthru
      _
    %v27 = vld [vmem:[%s0] sm:$0xff]
    %v28 = vld [vmem:[%s1] sm:$0x3]
    %30 = vset.pattern.permute.xlu0 0
    %31 = vperm.xlu0 %30, %v27
    %v32 = vpop.permute.xlu0 %31
    %v34 = vperm.slane %v28, 0
    %v35 = vmul.f32 %v32, %v34
    %36 = vset.pattern.permute.xlu0 1
    %37 = vperm.xlu0 %36, %v27
    %v38 = vpop.permute.xlu0 %37
    %v40 = vperm.slane %v28, 1
    %v41 = vmul.f32 %v38, %v40
    %v42 = vadd.f32 %v35, %v41
    %v43 = vld [vmem:[%s2] sm:$0x1]
    %v45 = vperm.slane %v43, 0
    %v47 = vadd.f32 %v42, %v45
    %v48 = vmax.f32 %v47, 0.0
    %v49 = vld [vmem:[%s3] sm:$0xff]
    %v50 = vld [vmem:[%s3 + $0x8] sm:$0xff]
    %v51 = vld [vmem:[%s3 + $0x10] sm:$0xff]
    %v52 = vld [vmem:[%s3 + $0x18] sm:$0xff]
    %v53 = vld [vmem:[%s3 + $0x20] sm:$0xff]
    %v54 = vld [vmem:[%s3 + $0x28] sm:$0xff]
    %v55 = vld [vmem:[%s3 + $0x30] sm:$0xff]
    %v56 = vld [vmem:[%s3 + $0x38] sm:$0xff]
    %v57 = vld [vmem:[%s3 + $0x40] sm:$0xff]
    %v58 = vld [vmem:[%s3 + $0x48] sm:$0xff]
    %v59 = vld [vmem:[%s3 + $0x50] sm:$0xff]
    %v60 = vld [vmem:[%s3 + $0x58] sm:$0xff]
    %v61 = vld [vmem:[%s3 + $0x60] sm:$0xff]
    %v62 = vld [vmem:[%s3 + $0x68] sm:$0xff]
    %v63 = vld [vmem:[%s3 + $0x70] sm:$0xff]
    %v64 = vld [vmem:[%s3 + $0x78] sm:$0xff]
    %v65 = vld [vmem:[%s4] sm:$0x1]
    %v67 = vperm.slane %v65, 0
    %69 = vmatpush.msra.mxu0 %v64
    %70 = vmatpush.msra.mxu0 %v63
    %71 = vmatpush.msra.mxu0 %v62
    %72 = vmatpush.msra.mxu0 %v61
    %73 = vmatpush.msra.mxu0 %v60
    %74 = vmatpush.msra.mxu0 %v59
    %75 = vmatpush.msra.mxu0 %v58
    %76 = vmatpush.msra.mxu0 %v57
    %77 = vmatpush.msra.mxu0 %v56
    %78 = vmatpush.msra.mxu0 %v55
    %79 = vmatpush.msra.mxu0 %v54
    %80 = vmatpush.msra.mxu0 %v53
    %81 = vmatpush.msra.mxu0 %v52
    %82 = vmatpush.msra.mxu0 %v51
    %83 = vmatpush.msra.mxu0 %v50
    %84 = vmatpush.msra.mxu0 %v49
    %85 = vmatmul.f32.gmra.mxu0 %v48
    %v86 = vpop.f32.mrf.mxu0
    %v87 = vadd.f32 %v67, %v86
    %88 = vdwg.mxu0
    %v89 = vmax.f32 %v87, 0.0
    %v90 = vld [vmem:[%s5] sm:$0xff]
    %v91 = vld [vmem:[%s5 + $0x8] sm:$0xff]
    %v92 = vld [vmem:[%s5 + $0x10] sm:$0xff]
    %v93 = vld [vmem:[%s5 + $0x18] sm:$0xff]
    %v94 = vld [vmem:[%s5 + $0x20] sm:$0xff]
    %v95 = vld [vmem:[%s5 + $0x28] sm:$0xff]
    %v96 = vld [vmem:[%s5 + $0x30] sm:$0xff]
    %v97 = vld [vmem:[%s5 + $0x38] sm:$0xff]
    %v98 = vld [vmem:[%s5 + $0x40] sm:$0xff]
    %v99 = vld [vmem:[%s5 + $0x48] sm:$0xff]
    %v100 = vld [vmem:[%s5 + $0x50] sm:$0xff]
    %v101 = vld [vmem:[%s5 + $0x58] sm:$0xff]
    %v102 = vld [vmem:[%s5 + $0x60] sm:$0xff]
    %v103 = vld [vmem:[%s5 + $0x68] sm:$0xff]
    %v104 = vld [vmem:[%s5 + $0x70] sm:$0xff]
    %v105 = vld [vmem:[%s5 + $0x78] sm:$0xff]
    %v106 = vld [vmem:[%s6] sm:$0x1]
    %v108 = vperm.slane %v106, 0
    %110 = vmatpush.msra.mxu0 %v105
    %111 = vmatpush.msra.mxu0 %v104
    %112 = vmatpush.msra.mxu0 %v103
    %113 = vmatpush.msra.mxu0 %v102
    %114 = vmatpush.msra.mxu0 %v101
    %115 = vmatpush.msra.mxu0 %v100
    %116 = vmatpush.msra.mxu0 %v99
    %117 = vmatpush.msra.mxu0 %v98
    %118 = vmatpush.msra.mxu0 %v97
    %119 = vmatpush.msra.mxu0 %v96
    %120 = vmatpush.msra.mxu0 %v95
    %121 = vmatpush.msra.mxu0 %v94
    %122 = vmatpush.msra.mxu0 %v93
    %123 = vmatpush.msra.mxu0 %v92
    %124 = vmatpush.msra.mxu0 %v91
    %125 = vmatpush.msra.mxu0 %v90
    %126 = vmatmul.f32.gmra.mxu0 %v89
    %v127 = vpop.f32.mrf.mxu0
    %v128 = vadd.f32 %v108, %v127
    %129 = vdwg.mxu0
    %130 = vst [vmem:[#allocation2] sm:$0xff] %v128
    // Predicated region
    $region30: #{backbone_forward.1} parent=1 // pred_check
      _
    $region31: #{backbone_forward.1} parent=1 // pred_check_branch
      %132 = sbr.rel (0) target = $region33
    $region32: #{backbone_forward.1} parent=1 // pred_region
      %134 = vsyncadd [#allocation3], 0
      %s136 = sshll.u32 [#allocation2], 4
      %s137 = int_to_ptr.vmem [resolvable:$true] %s136
      %s138 = sshll.u32 %s7, 4
      %s139 = int_to_ptr.hbm [resolvable:$true] %s138
      %141 = dma.vmem_to_hbm [thread:$0]  %s137, 128, %s139, [#allocation3]
    $region33: #{backbone_forward.1} parent=1 // pred_fallthru
      _
    // Predicated region
    $region34: #{backbone_forward.1} parent=1 // pred_check
      _
    $region35: #{backbone_forward.1} parent=1 // pred_check_branch
      %143 = sbr.rel (0) target = $region37
    $region36: #{backbone_forward.1} parent=1 // pred_region
      %145 = dma.done [#allocation3], 128
    $region37: #{backbone_forward.1} parent=1 // pred_fallthru
      _
    %146 = vsyncpa [#allocation3], 1

</llo_original>
